<compile_context>
chip_gen: v5e
topology: v5e:2x2
jax: 0.10.0
libtpu: 0.0.40
codegen_flags: <defaults>
</compile_context>

<pallas_src>
import functools

import jax
import jax.numpy as jnp
from jax.experimental import pallas as pl
from jax.experimental.pallas import tpu as pltpu

THRESH = 0.5
DECAY = 0.2


# ---------------------------------------------------------------------------
# Kernels
# ---------------------------------------------------------------------------
def _snn_first_kernel(x_ref, w_ref, spike_ref, mem_ref):
    """First timestep (is_first == 1): membrane starts at zero -> no state read."""
    # One fused MXU matmul: all 3 kh conv bands + bias (ones column) in one push.
    mem = jnp.dot(x_ref[...], w_ref[...], preferred_element_type=jnp.float32)
    gt = mem > THRESH                                   # act_fun forward
    spike_ref[...] = gt.astype(spike_ref.dtype)         # bf16 spikes (0/1 exact)
    mem_ref[...] = jnp.where(gt, 0.0, mem * DECAY)      # mem * decay * (1 - spike)


def _snn_step_kernel(x_ref, w_ref, mem_in_ref, spike_ref, mem_out_ref):
    """Subsequent timesteps: mem += conv; spike; leaky reset (state aliased)."""
    mem = mem_in_ref[...] + jnp.dot(x_ref[...], w_ref[...],
                                    preferred_element_type=jnp.float32)
    gt = mem > THRESH
    spike_ref[...] = gt.astype(spike_ref.dtype)
    mem_out_ref[...] = jnp.where(gt, 0.0, mem * DECAY)


# ---------------------------------------------------------------------------
# Weight / layout preparation (run ONCE per sequence, not per timestep)
# ---------------------------------------------------------------------------
def _round_up(x, m):
    return ((x + m - 1) // m) * m


def _band_weights(weight, W):
    """(Cout, Cin, 3, 3) -> (3, (W+2)*Cin, W*Cout) banded conv matrix.

    band[kh, wp*Cin + ci, w*Cout + co] = weight[co, ci, kh, wp - w] if 0<=wp-w<=2
    so a padded input row matmul'd against band[kh] yields the kh-row conv
    contribution directly in lane-dense (w, co) order.
    """
    Cout, Cin, _, _ = weight.shape
    w_t = jnp.transpose(weight, (2, 3, 1, 0))             # (3, 3, Cin, Cout)
    wp = jnp.arange(W + 2)[:, None]                       # padded column index
    w_ = jnp.arange(W)[None, :]                           # output column index
    kw = wp - w_
    mask = (kw >= 0) & (kw <= 2)
    band = w_t[:, jnp.clip(kw, 0, 2), :, :]               # (3, W+2, W, Cin, Cout)
    band = band * mask[None, :, :, None, None]
    band = jnp.transpose(band, (0, 1, 3, 2, 4))           # (3, W+2, Cin, W, Cout)
    return band.reshape(3, (W + 2) * Cin, W * Cout).astype(jnp.float32)


def prepare_snn_params(weight, bias, W):
    """Fused conv+bias matrix (K, W*Cout): rows [0,3*WCin) conv bands, row 3*WCin
    the tiled bias (matched by a ones column in the input), rest zero padding."""
    Cout, Cin, kh, kw = weight.shape
    assert (kh, kw) == (3, 3), "SNN_2d_1 uses a 3x3 conv"
    WCin = (W + 2) * Cin
    WCout = W * Cout
    K = _round_up(3 * WCin + 1, 8)
    w_flat = _band_weights(weight, W).reshape(3 * WCin, WCout)
    b_row = jnp.tile(bias.astype(jnp.float32), W).reshape(1, WCout)
    pad = jnp.zeros((K - 3 * WCin - 1, WCout), jnp.float32)
    return jnp.concatenate([w_flat, b_row, pad], axis=0)   # (K, WCout)


# ---------------------------------------------------------------------------
# Tiling / VMEM budget (hardware-derived)
# ---------------------------------------------------------------------------
def _vmem_capacity_bytes():
    try:
        return int(pltpu.get_tpu_info().vmem_capacity_bytes)
    except Exception:
        return 64 << 20   # conservative (v7x physical VMEM per TensorCore)


def _pick_row_tile(rows, K, WCout, vmem_cap):
    """Rows per grid step: multiple of 8, large enough to amortize per-step
    overhead, fits a double-buffered VMEM budget, and yields >= 2 grid steps
    when possible (v7x has 2 TensorCores sharing the 'parallel' axis)."""
    bytes_per_row = 2 * 4 * (K + WCout) + 2 * (2 * WCout + 4 * WCout)
    budget = min(int(vmem_cap * 0.4), 40 << 20) - 2 * 4 * K * WCout
    budget = max(budget, 1 << 20)
    rm = min(rows, 512, max(8, budget // bytes_per_row))
    rm = max(8, (rm // 8) * 8)
    if rm >= rows and rows >= 16:
        rm = max(8, ((rows // 2) // 8) * 8)
    return rm


# ---------------------------------------------------------------------------
# Functional forward
# ---------------------------------------------------------------------------
def snn_2d_1_forward(x, mem_flat, w_full):
    """One SNN_2d_1 timestep.

    x        : (N, Cin, H, W) f32 NCHW (PyTorch layout).
    mem_flat : carried membrane state (Rp, W*Cout) f32 in the kernel's flat
               lane-dense layout, or None for is_first == 1.
    w_full   : (K, W*Cout) from prepare_snn_params (constant per sequence).
    Returns (spike_flat bf16 (Rp, W*Cout), new_mem_flat f32 (Rp, W*Cout)).
    """
    N, Cin, H, W = x.shape
    WCin = (W + 2) * Cin
    K, WCout = w_full.shape
    rows = N * H

    vmem_cap = _vmem_capacity_bytes()
    rm = _pick_row_tile(rows, K, WCout, vmem_cap)
    Rp = _round_up(rows, rm)

    # ---- layout glue (plain JAX): kh-only im2col + folded-bias ones column ----
    # TODO(synk): when chained after another SNN Pallas layer, keep activations in
    # the flat (rows, W*C) layout and skip the NCHW transpose / pad here.
    x_nhwc = jnp.transpose(x, (0, 2, 3, 1)).astype(jnp.float32)          # (N,H,W,Cin)
    xr = jnp.pad(x_nhwc, ((0, 0), (1, 1), (1, 1), (0, 0))).reshape(N, H + 2, WCin)
    xim = jnp.concatenate([xr[:, 0:H], xr[:, 1:H + 1], xr[:, 2:H + 2]], axis=-1)
    xim = xim.reshape(rows, 3 * WCin)
    tail = jnp.concatenate(
        [jnp.ones((rows, 1), jnp.float32),
         jnp.zeros((rows, K - 3 * WCin - 1), jnp.float32)], axis=-1)
    xim = jnp.concatenate([xim, tail], axis=-1)                          # (rows, K)
    if Rp != rows:
        xim = jnp.pad(xim, ((0, Rp - rows), (0, 0)))

    grid = (Rp // rm,)
    x_spec = pl.BlockSpec((rm, K), lambda i: (i, 0))
    w_spec = pl.BlockSpec((K, WCout), lambda i: (0, 0))
    s_spec = pl.BlockSpec((rm, WCout), lambda i: (i, 0))
    out_shape = (jax.ShapeDtypeStruct((Rp, WCout), jnp.bfloat16),        # spike
                 jax.ShapeDtypeStruct((Rp, WCout), jnp.float32))         # membrane

    first = mem_flat is None
    need = 2 * rm * 4 * (K + WCout) + 2 * rm * (2 + 4) * WCout + 2 * 4 * K * WCout
    vmem_limit = int(min(max(need + (1 << 20), 16 << 20), int(vmem_cap * 0.6)))
    params = pltpu.CompilerParams(dimension_semantics=("parallel",),
                                  vmem_limit_bytes=vmem_limit)
    cost = pl.CostEstimate(
        flops=2 * Rp * K * WCout,
        transcendentals=0,
        bytes_accessed=4 * (Rp * K + K * WCout + (1 if first else 2) * Rp * WCout)
        + 2 * Rp * WCout)

    if first:
        # is_first == 1: dedicated kernel, no zero-state HBM write/read.
        return pl.pallas_call(
            _snn_first_kernel,
            out_shape=out_shape,
            grid_spec=pltpu.PrefetchScalarGridSpec(
                num_scalar_prefetch=0, grid=grid,
                in_specs=[x_spec, w_spec],
                out_specs=[s_spec, s_spec]),
            compiler_params=params,
            cost_estimate=cost,
        )(xim, w_full)

    mem_in = mem_flat.astype(jnp.float32)
    assert mem_in.shape == (Rp, WCout), (mem_in.shape, (Rp, WCout))
    return pl.pallas_call(
        _snn_step_kernel,
        out_shape=out_shape,
        grid_spec=pltpu.PrefetchScalarGridSpec(
            num_scalar_prefetch=0, grid=grid,
            in_specs=[x_spec, w_spec, s_spec],
            out_specs=[s_spec, s_spec]),
        input_output_aliases={2: 1},      # reuse the mem buffer for new membrane
        compiler_params=params,
        cost_estimate=cost,
    )(xim, w_full, mem_in)


def spike_flat_to_nchw(flat, N, H, W, C):
    """Convert the kernel's flat lane-dense layout back to NCHW (model boundary)."""
    return flat[:N * H].astype(jnp.float32).reshape(N, H, W, C).transpose(0, 3, 1, 2)


# ---------------------------------------------------------------------------
# Pure-JAX reference (for correctness checking only)
# ---------------------------------------------------------------------------
def _ref_step(x, mem_prev, weight, bias):
    conv = jax.lax.conv_general_dilated(
        x, weight, window_strides=(1, 1), padding=((1, 1), (1, 1)),
        dimension_numbers=("NCHW", "OIHW", "NCHW"))
    conv = conv + bias[None, :, None, None]
    mem = mem_prev + conv
    spike = (mem > THRESH).astype(jnp.float32)
    return spike, mem * DECAY * (1.0 - spike), mem


if __name__ == "__main__":
    # Small deterministic setup consistent with SNN_2d_1(input_c=4, output_c=8).
    N, Cin, Cout, H, W = 2, 4, 8, 16, 16

    key = jax.random.PRNGKey(0)
    kx, kw_, kb = jax.random.split(key, 3)
    x = jax.random.normal(kx, (N, Cin, H, W), dtype=jnp.float32)
    fan_in = Cin * 3 * 3
    weight = jax.random.normal(kw_, (Cout, Cin, 3, 3), dtype=jnp.float32) / jnp.sqrt(fan_in)
    bias = jax.random.normal(kb, (Cout,), dtype=jnp.float32) * 0.01

    # Hoisted once per sequence (not per timestep).
    w_full = prepare_snn_params(weight, bias, W)

    fwd_first = jax.jit(lambda xi, wf: snn_2d_1_forward(xi, None, wf))
    fwd_step = jax.jit(snn_2d_1_forward)

    # Time step 1 (is_first=1: membrane starts from zero, no state DMA).
    spike1, mem1 = fwd_first(x, w_full)
    # Time step 2: carry the membrane state in the kernel's flat layout.
    spike2, mem2 = fwd_step(x, mem1, w_full)
    jax.block_until_ready((spike1, mem1, spike2, mem2))

    # Correctness check vs pure-JAX reference (skip elements numerically sitting
    # on the 0.5 threshold, where MXU-vs-XLA rounding could differ).
    r_spike1, r_mem1, pre1 = _ref_step(x, 0.0, weight, bias)
    r_spike2, r_mem2, pre2 = _ref_step(x, r_mem1, weight, bias)
    safe1 = jnp.abs(pre1 - THRESH) > 1e-4
    safe2 = jnp.abs(pre2 - THRESH) > 1e-4
    safe12 = safe1 & safe2

    s1 = spike_flat_to_nchw(spike1, N, H, W, Cout)
    s2 = spike_flat_to_nchw(spike2, N, H, W, Cout)
    m2 = spike_flat_to_nchw(mem2, N, H, W, Cout)
    assert bool(jnp.all((s1 == r_spike1) | ~safe1))
    assert bool(jnp.all((s2 == r_spike2) | ~safe12))
    assert bool(jnp.all((jnp.abs(m2 - r_mem2) < 1e-4) | ~safe12))

    print("KERNEL_OK")
</pallas_src>

<mosaic_0001>
module attributes {stable_mosaic.version = 11 : i64} {
  func.func @_snn_first_kernel(%arg0: i32, %arg1: memref<16x224xf32, #tpu.memory_space<vmem>>, %arg2: memref<224x128xf32, #tpu.memory_space<vmem>>, %arg3: memref<16x128xbf16, #tpu.memory_space<vmem>>, %arg4: memref<16x128xf32, #tpu.memory_space<vmem>>) attributes {dimension_semantics = [#tpu.dimension_semantics<parallel>], iteration_bounds = array<i64: 2>, scalar_prefetch = 0 : i64, scratch_operands = 0 : i64, tpu.core_type = #tpu.core_type<tc>, window_params = [{transform_indices = @transform_0, window_bounds = array<i64: 16, 224>}, {pipeline_mode = #tpu.pipeline_mode<synchronous>, transform_indices = @transform_1, window_bounds = array<i64: 224, 128>}, {transform_indices = @transform_2, window_bounds = array<i64: 16, 128>}, {transform_indices = @transform_3, window_bounds = array<i64: 16, 128>}]} {
    %c0 = arith.constant 0 : index
    %c0_0 = arith.constant 0 : index
    %0 = vector.load %arg1[%c0, %c0_0] : memref<16x224xf32, #tpu.memory_space<vmem>>, vector<16x224xf32>
    %c0_1 = arith.constant 0 : index
    %c0_2 = arith.constant 0 : index
    %1 = vector.load %arg2[%c0_1, %c0_2] : memref<224x128xf32, #tpu.memory_space<vmem>>, vector<224x128xf32>
    %cst = arith.constant dense<0.000000e+00> : vector<16x128xf32>
    %2 = tpu.matmul %0, %1, %cst {dimension_numbers = #tpu.dot_dimension_numbers<[1], [0], [0], [1], [0, 0, 1, 1], [], []>} : vector<16x224xf32>, vector<224x128xf32>, vector<16x128xf32> -> vector<16x128xf32>
    %cst_3 = arith.constant 5.000000e-01 : f32
    %3 = vector.broadcast %cst_3 : f32 to vector<16x128xf32>
    %4 = arith.cmpf ogt, %2, %3 : vector<16x128xf32>
    %5 = arith.extui %4 : vector<16x128xi1> to vector<16x128xi32>
    %6 = arith.sitofp %5 : vector<16x128xi32> to vector<16x128xf32>
    %7 = arith.truncf %6 : vector<16x128xf32> to vector<16x128xbf16>
    %c0_4 = arith.constant 0 : index
    %c0_5 = arith.constant 0 : index
    %8 = vector.load %arg3[%c0_4, %c0_5] : memref<16x128xbf16, #tpu.memory_space<vmem>>, vector<16x128xbf16>
    tpu.vector_store %arg3[%c0_4, %c0_5], %7 {strides = array<i32>} : memref<16x128xbf16, #tpu.memory_space<vmem>>, vector<16x128xbf16>,
    %cst_6 = arith.constant 2.000000e-01 : f32
    %9 = vector.broadcast %cst_6 : f32 to vector<16x128xf32>
    %10 = arith.mulf %2, %9 : vector<16x128xf32>
    %cst_7 = arith.constant 0.000000e+00 : f32
    %11 = vector.broadcast %cst_7 : f32 to vector<16x128xf32>
    %12 = arith.select %4, %11, %10 : vector<16x128xi1>, vector<16x128xf32>
    %c0_8 = arith.constant 0 : index
    %c0_9 = arith.constant 0 : index
    %13 = vector.load %arg4[%c0_8, %c0_9] : memref<16x128xf32, #tpu.memory_space<vmem>>, vector<16x128xf32>
    tpu.vector_store %arg4[%c0_8, %c0_9], %12 {strides = array<i32>} : memref<16x128xf32, #tpu.memory_space<vmem>>, vector<16x128xf32>,
    return
  }
  func.func @transform_0(%arg0: i32) -> (i32, i32) {
    %c0_i32 = arith.constant 0 : i32
    %c0_i32_0 = arith.constant 0 : i32
    return %arg0, %c0_i32 : i32, i32
  }
  func.func @transform_1(%arg0: i32) -> (i32, i32) {
    %c0_i32 = arith.constant 0 : i32
    %c0_i32_0 = arith.constant 0 : i32
    %c0_i32_1 = arith.constant 0 : i32
    return %c0_i32, %c0_i32_0 : i32, i32
  }
  func.func @transform_2(%arg0: i32) -> (i32, i32) {
    %c0_i32 = arith.constant 0 : i32
    %c0_i32_0 = arith.constant 0 : i32
    return %arg0, %c0_i32 : i32, i32
  }
  func.func @transform_3(%arg0: i32) -> (i32, i32) {
    %c0_i32 = arith.constant 0 : i32
    %c0_i32_0 = arith.constant 0 : i32
    return %arg0, %c0_i32 : i32, i32
  }
}

</mosaic_0001>

<llo_original>
// kernel: _lambda_.1
$region0: #{_lambda_.1}
  #allocation0 [shape = 'u32[]', space=smem, size = 0x4, offset = 0x4, fixed_abs, tag = 'smem constant byte address 0x4 - core index']
  #allocation1 [shape = 'u32[72,128]{1,0:T(1,128)}', space=vmem, size = 0x9000, scoped, tag = 'internal scratch']
  %s0 = inlined_call_operand.vmem [shape: f32[32,224], index: 0, kind: input, shape index: {}]
  %s1 = inlined_call_operand.vmem [shape: f32[224,128], index: 1, kind: input, shape index: {}]
  %s2 = inlined_call_operand.hbm [shape: bf16[32,128], index: 2, kind: output, shape index: {0}]
  %s3 = inlined_call_operand.hbm [shape: f32[32,128], index: 3, kind: output, shape index: {1}]
  %4 = xla_tuple %s2, %s3
  %s5 = sld [smem:[#allocation0]]
  $region49: #{_lambda_.1} parent=0
    _
  %s7 = ssub.s32 1, %s5
  %s8 = scalar_select 0, %s7, %s5
  $region1: #{_lambda_.1} parent=0
    #allocation2 [shape = 'u8[8192]{0}', space=vmem, size = 0x2000, scoped, tag = 'output window, operand 0']
    #allocation3 [shape = 's32[2]{0}', space=sflag, size = 0x8, scoped, tag = 'scoped memory for _lambda_.1']
    #allocation4 [shape = 'u8[16384]{0}', space=vmem, size = 0x4000, scoped, tag = 'output window, operand 1']
    #allocation5 [shape = 's32[2]{0}', space=sflag, size = 0x8, scoped, tag = 'scoped memory for _lambda_.1']
    %9 = vsyncpa [#allocation3], 0
    %s10 = scalar_lea.sflag [#allocation3], 1
    %11 = vsyncpa %s10, 0
    %12 = vsyncpa [#allocation5], 0
    %s13 = scalar_lea.sflag [#allocation5], 1
    %14 = vsyncpa %s13, 0
    loop: start=0, step=1, limit=4
    $region2: #{_lambda_.1} parent=1 // loop_pre_header
      _
    $region3: #{_lambda_.1} parent=1 // loop_header
      %s16 = sphi 0, %s20
      %p17 = scmp.ge.s32.totalorder %s16, 4
      %s26 = sphi 0, %s28
      %s29 = sphi 0, %s26
      %s30 = sphi 0, %s29
      %s46 = sphi 0, %s30
      %s50 = sphi 0, %s50
      %s52 = sphi 0, %s50
      %s53 = sphi 0, %s52
      %s67 = sphi 0, %s53
      %s73 = sphi 0, %s75
      %s76 = sphi 0, %s73
      %s77 = sphi 0, %s76
      %s93 = sphi 0, %s77
      %s99 = sphi 0, %s101
      %s102 = sphi 0, %s99
      %s103 = sphi 0, %s102
      %s119 = sphi 0, %s103
    $region4: #{_lambda_.1} parent=1 // loop_header_branch
      %19 = sbr.rel (%p17) target = $region8
    $region5: #{_lambda_.1} parent=1 // loop_body
      %s21 = ssub.s32 %s16, 1
      %s22 = ssub.s32 %s16, 2
      %s23 = sadd.s32 %s16, 1
      %s24 = ssub.s32 %s16, %s23
      %p25 = scmp.eq.s32.totalorder %s24, 0
      %s27 = sadd.s32 %s26, 1
      %s28 = scalar_select %p25, %s26, %s27
      %p31 = pneg %p25
      %p32 = scmp.eq.s32.totalorder %s16, 1
      %p33 = por %p31, %p32
      %p34 = scmp.ne.s32.totalorder %s26, %s29
      %p35 = scmp.eq.s32.totalorder %s16, 0
      %p36 = por %p34, %p35
      %p37 = scmp.ne.s32.totalorder %s26, %s29
      %p38 = scmp.eq.s32.totalorder %s21, 1
      %p39 = por %p37, %p38
      %p40 = scmp.ne.s32.totalorder %s29, %s30
      %p41 = scmp.eq.s32.totalorder %s21, 0
      %p42 = por %p40, %p41
      %p43 = scmp.ne.s32.totalorder %s29, %s30
      %p44 = scmp.eq.s32.totalorder %s22, 1
      %p45 = por %p43, %p44
      %p47 = scmp.ne.s32.totalorder %s30, %s46
      %p48 = scmp.eq.s32.totalorder %s22, 0
      %p49 = por %p47, %p48
      %s51 = sadd.s32 %s50, 1
      %p54 = scmp.eq.s32.totalorder %s16, 1
      %p55 = scmp.ne.s32.totalorder %s50, %s52
      %p56 = scmp.eq.s32.totalorder %s16, 0
      %p57 = por %p55, %p56
      %p58 = scmp.ne.s32.totalorder %s50, %s52
      %p59 = scmp.eq.s32.totalorder %s21, 1
      %p60 = por %p58, %p59
      %p61 = scmp.ne.s32.totalorder %s52, %s53
      %p62 = scmp.eq.s32.totalorder %s21, 0
      %p63 = por %p61, %p62
      %p64 = scmp.ne.s32.totalorder %s52, %s53
      %p65 = scmp.eq.s32.totalorder %s22, 1
      %p66 = por %p64, %p65
      %p68 = scmp.ne.s32.totalorder %s53, %s67
      %p69 = scmp.eq.s32.totalorder %s22, 0
      %p70 = por %p68, %p69
      %s71 = ssub.s32 %s16, %s23
      %p72 = scmp.eq.s32.totalorder %s71, 0
      %s74 = sadd.s32 %s73, 1
      %s75 = scalar_select %p72, %s73, %s74
      %p78 = pneg %p72
      %p79 = scmp.eq.s32.totalorder %s16, 1
      %p80 = por %p78, %p79
      %p81 = scmp.ne.s32.totalorder %s73, %s76
      %p82 = scmp.eq.s32.totalorder %s16, 0
      %p83 = por %p81, %p82
      %p84 = scmp.ne.s32.totalorder %s73, %s76
      %p85 = scmp.eq.s32.totalorder %s21, 1
      %p86 = por %p84, %p85
      %p87 = scmp.ne.s32.totalorder %s76, %s77
      %p88 = scmp.eq.s32.totalorder %s21, 0
      %p89 = por %p87, %p88
      %p90 = scmp.ne.s32.totalorder %s76, %s77
      %p91 = scmp.eq.s32.totalorder %s22, 1
      %p92 = por %p90, %p91
      %p94 = scmp.ne.s32.totalorder %s77, %s93
      %p95 = scmp.eq.s32.totalorder %s22, 0
      %p96 = por %p94, %p95
      %s97 = ssub.s32 %s16, %s23
      %p98 = scmp.eq.s32.totalorder %s97, 0
      %s100 = sadd.s32 %s99, 1
      %s101 = scalar_select %p98, %s99, %s100
      %p104 = pneg %p98
      %p105 = scmp.eq.s32.totalorder %s16, 1
      %p106 = por %p104, %p105
      %p107 = scmp.ne.s32.totalorder %s99, %s102
      %p108 = scmp.eq.s32.totalorder %s16, 0
      %p109 = por %p107, %p108
      %p110 = scmp.ne.s32.totalorder %s99, %s102
      %p111 = scmp.eq.s32.totalorder %s21, 1
      %p112 = por %p110, %p111
      %p113 = scmp.ne.s32.totalorder %s102, %s103
      %p114 = scmp.eq.s32.totalorder %s21, 0
      %p115 = por %p113, %p114
      %p116 = scmp.ne.s32.totalorder %s102, %s103
      %p117 = scmp.eq.s32.totalorder %s22, 1
      %p118 = por %p116, %p117
      %p120 = scmp.ne.s32.totalorder %s103, %s119
      %p121 = scmp.eq.s32.totalorder %s22, 0
      %p122 = por %p120, %p121
      %p123 = scmp.le.s32.totalorder 1, %s16
      %p124 = scmp.lt.s32.totalorder %s16, 3
      %p125 = pnand %p123, %p124
      %p126 = pneg %p125
      // Predicated region
      $region9: #{_lambda_.1} parent=5 // pred_check
        _
      $region10: #{_lambda_.1} parent=5 // pred_check_branch
        %128 = sbr.rel (%p125) target = $region12
      $region11: #{_lambda_.1} parent=5 // pred_region
        %s129 = ssub.s32 %s16, 1
        // Predicated region
        $region13: #{_lambda_.1} parent=11 // pred_check
          %p130 = pneg %p63
        $region14: #{_lambda_.1} parent=11 // pred_check_branch
          %132 = sbr.rel (%p130) target = $region16
        $region15: #{_lambda_.1} parent=11 // pred_region
          _
        $region16: #{_lambda_.1} parent=11 // pred_fallthru
          _
      $region12: #{_lambda_.1} parent=5 // pred_fallthru
        _
      %p133 = scmp.lt.s32.totalorder %s16, 2
      // Predicated region
      $region17: #{_lambda_.1} parent=5 // pred_check
        %p134 = pneg %p133
      $region18: #{_lambda_.1} parent=5 // pred_check_branch
        %136 = sbr.rel (%p134) target = $region20
      $region19: #{_lambda_.1} parent=5 // pred_region
        // Predicated region
        $region21: #{_lambda_.1} parent=19 // pred_check
          %p137 = pneg %p36
        $region22: #{_lambda_.1} parent=19 // pred_check_branch
          %139 = sbr.rel (%p137) target = $region24
        $region23: #{_lambda_.1} parent=19 // pred_region
          %s140 = smul.u32 2, %s16
          %p141 = scmp.lt.s32.totalorder %s140, 3
          %s142 = scalar_select %p141, %s140, 3
          %s143 = smul.addr %s142, 2
          %s144 = smul.addr %s143, 8
          %s145 = scalar_lea.vmem %s0, %s144
          %s146 = smul.u32 2, %s16
        $region24: #{_lambda_.1} parent=19 // pred_fallthru
          _
      $region20: #{_lambda_.1} parent=5 // pred_fallthru
        _
      %p147 = scmp.le.s32.totalorder 1, %s16
      %p148 = scmp.lt.s32.totalorder %s16, 3
      %p149 = pnand %p147, %p148
      %p150 = pneg %p149
      // Predicated region
      $region25: #{_lambda_.1} parent=5 // pred_check
        _
      $region26: #{_lambda_.1} parent=5 // pred_check_branch
        %152 = sbr.rel (%p149) target = $region28
      $region27: #{_lambda_.1} parent=5 // pred_region
        %s153 = ssub.s32 %s16, 1
        %s154 = smul.u32 2, %s21
        %p155 = scmp.lt.s32.totalorder %s154, 3
        %s156 = scalar_select %p155, %s154, 3
        %s157 = smul.addr %s156, 2
        %s158 = smul.addr %s157, 8
        %s159 = scalar_lea.vmem %s0, %s158
        %p160 = pneg %p42
        %p161 = pneg %p39
        %p162 = pneg %p63
        %p163 = pneg %p60
        %p164 = pneg %p89
        %p165 = pneg %p86
        %s166 = sand.u32 %s76, 1
        %s167 = scalar_lea.sflag [#allocation3], %s166
        %s168 = sand.u32 %s76, 1
        %s169 = smul.addr %s168, 8
        %s170 = scalar_lea.vmem [#allocation2], %s169
        %p171 = pneg %p115
        %p172 = pneg %p112
        %s173 = sand.u32 %s102, 1
        %s174 = scalar_lea.sflag [#allocation5], %s173
        %s175 = sand.u32 %s102, 1
        %s176 = smul.addr %s175, 16
        %s177 = scalar_lea.vmem [#allocation4], %s176
        %s178 = smul.u32 2, %s21
        %p179 = scmp.lt.s32.totalorder %s178, 3
        %s180 = scalar_select %p179, %s178, 3
        %s181 = smul.addr %s180, 2
        %s182 = smul.addr %s181, 8
        %s183 = scalar_lea.vmem %s0, %s182
        %s184 = smul.u32 2, %s21
        %s185 = smul.u32 2, %s21
        %s186 = smul.u32 2, %s21
        %v187 = vld [vmem:[%s183] sm:$0xff]
        %v188 = vld [vmem:[%s183 + $0x8] sm:$0xff]
        %v189 = vld [vmem:[%s183 + $0x10] sm:$0xff]
        %v190 = vld [vmem:[%s183 + $0x18] sm:$0xff]
        %v191 = vld [vmem:[%s1] sm:$0xff]
        %v192 = vld [vmem:[%s1 + $0x8] sm:$0xff]
        %v193 = vld [vmem:[%s1 + $0x10] sm:$0xff]
        %v194 = vld [vmem:[%s1 + $0x18] sm:$0xff]
        %v195 = vld [vmem:[%s1 + $0x20] sm:$0xff]
        %v196 = vld [vmem:[%s1 + $0x28] sm:$0xff]
        %v197 = vld [vmem:[%s1 + $0x30] sm:$0xff]
        %v198 = vld [vmem:[%s1 + $0x38] sm:$0xff]
        %v199 = vld [vmem:[%s1 + $0x40] sm:$0xff]
        %v200 = vld [vmem:[%s1 + $0x48] sm:$0xff]
        %v201 = vld [vmem:[%s1 + $0x50] sm:$0xff]
        %v202 = vld [vmem:[%s1 + $0x58] sm:$0xff]
        %v203 = vld [vmem:[%s1 + $0x60] sm:$0xff]
        %v204 = vld [vmem:[%s1 + $0x68] sm:$0xff]
        %v205 = vld [vmem:[%s1 + $0x70] sm:$0xff]
        %v206 = vld [vmem:[%s1 + $0x78] sm:$0xff]
        %v207 = vld [vmem:[%s1 + $0x80] sm:$0xff]
        %v208 = vld [vmem:[%s1 + $0x88] sm:$0xff]
        %v209 = vld [vmem:[%s1 + $0x90] sm:$0xff]
        %v210 = vld [vmem:[%s1 + $0x98] sm:$0xff]
        %v211 = vld [vmem:[%s1 + $0xa0] sm:$0xff]
        %v212 = vld [vmem:[%s1 + $0xa8] sm:$0xff]
        %v213 = vld [vmem:[%s1 + $0xb0] sm:$0xff]
        %v214 = vld [vmem:[%s1 + $0xb8] sm:$0xff]
        %v215 = vld [vmem:[%s1 + $0xc0] sm:$0xff]
        %v216 = vld [vmem:[%s1 + $0xc8] sm:$0xff]
        %v217 = vld [vmem:[%s1 + $0xd0] sm:$0xff]
        %v218 = vld [vmem:[%s1 + $0xd8] sm:$0xff]
        %vm219 = vcmask 785408
        %v221 = vsel %vm219, %v188, 0
        %v224 = vsel %vm219, %v190, 0
        %226 = vmatpush.msra.mxu0 %v206
        %227 = vmatpush.msra.mxu0 %v205
        %228 = vmatpush.msra.mxu0 %v204
        %229 = vmatpush.msra.mxu0 %v203
        %230 = vmatpush.msra.mxu0 %v202
        %231 = vmatpush.msra.mxu0 %v201
        %232 = vmatpush.msra.mxu0 %v200
        %233 = vmatpush.msra.mxu0 %v199
        %234 = vmatpush.msra.mxu0 %v198
        %235 = vmatpush.msra.mxu0 %v197
        %236 = vmatpush.msra.mxu0 %v196
        %237 = vmatpush.msra.mxu0 %v195
        %238 = vmatpush.msra.mxu0 %v194
        %239 = vmatpush.msra.mxu0 %v193
        %240 = vmatpush.msra.mxu0 %v192
        %241 = vmatpush.msra.mxu0 %v191
        %242 = vmatmul.f32.gmra.mxu0 %v187
        %v243 = vpop.f32.mrf.mxu0
        %v244 = vadd.f32 0.0, %v243
        %245 = vmatmul.f32.gmra.mxu0 %v189
        %v246 = vpop.f32.mrf.mxu0
        %v247 = vadd.f32 0.0, %v246
        %248 = vdwg.mxu0
        %249 = vmatpush.msra.mxu0 0.0
        %250 = vmatpush.msra.mxu0 0.0
        %251 = vmatpush.msra.mxu0 0.0
        %252 = vmatpush.msra.mxu0 0.0
        %253 = vmatpush.msra.mxu0 %v218
        %254 = vmatpush.msra.mxu0 %v217
        %255 = vmatpush.msra.mxu0 %v216
        %256 = vmatpush.msra.mxu0 %v215
        %257 = vmatpush.msra.mxu0 %v214
        %258 = vmatpush.msra.mxu0 %v213
        %259 = vmatpush.msra.mxu0 %v212
        %260 = vmatpush.msra.mxu0 %v211
        %261 = vmatpush.msra.mxu0 %v210
        %262 = vmatpush.msra.mxu0 %v209
        %263 = vmatpush.msra.mxu0 %v208
        %264 = vmatpush.msra.mxu0 %v207
        %265 = vmatmul.f32.gmra.mxu0 %v221
        %v266 = vpop.f32.mrf.mxu0
        %v267 = vadd.f32 %v244, %v266
        %268 = vmatmul.f32.gmra.mxu0 %v224
        %v269 = vpop.f32.mrf.mxu0
        %v270 = vadd.f32 %v247, %v269
        %271 = vdwg.mxu0
        %vm272 = vcmp.gt.f32.partialorder %v267, 0.5
        %vm273 = vcmp.gt.f32.partialorder %v270, 0.5
        %v274 = vsel %vm272, 1, 0
        %v275 = vsel %vm273, 1, 0
        %v276 = vcvt.s32.f32 %v274
        %v277 = vcvt.s32.f32 %v275
        %v278 = vpack.c.bf16 %v276, %v276
        %v279 = vpack.c.bf16 %v277, %v277
        %280 = vst [vmem:[%s170] sm:$0xf] %v278
        %281 = vst [vmem:[%s170 + $0x4] sm:$0xf] %v279
        %v282 = vmul.f32 %v267, 0.2
        %v283 = vmul.f32 %v270, 0.2
        %v284 = vsel %vm272, 0.0, %v282
        %v285 = vsel %vm273, 0.0, %v283
        %286 = vst [vmem:[%s177] sm:$0xff] %v284
        %287 = vst [vmem:[%s177 + $0x8] sm:$0xff] %v285
        %s288 = sand.u32 %s76, 1
        %s289 = scalar_lea.sflag [#allocation3], %s288
        %s290 = sand.u32 %s76, 1
        %s291 = smul.addr %s290, 8
        %s292 = scalar_lea.vmem [#allocation2], %s291
        %s293 = sand.u32 %s102, 1
        %s294 = scalar_lea.sflag [#allocation5], %s293
        %s295 = sand.u32 %s102, 1
        %s296 = smul.addr %s295, 16
        %s297 = scalar_lea.vmem [#allocation4], %s296
        // Predicated region
        $region29: #{_lambda_.1} parent=27 // pred_check
          %p298 = pneg %p86
        $region30: #{_lambda_.1} parent=27 // pred_check_branch
          %300 = sbr.rel (%p298) target = $region32
        $region31: #{_lambda_.1} parent=27 // pred_region
          %s301 = smul.u32 2, %s21
          %303 = vsyncadd %s289, 0
          %s304 = smul.addr %s301, 4
          %s305 = scalar_lea.hbm %s2, %s304
          %s306 = sshll.u32 %s292, 4
          %s307 = int_to_ptr.vmem [resolvable:$true] %s306
          %s308 = sshll.u32 %s305, 4
          %s309 = int_to_ptr.hbm [resolvable:$true] %s308
          %314 = dma.vmem_to_hbm [thread:$0]  %s307, 128, %s309, %s289, 64, 64, 4
        $region32: #{_lambda_.1} parent=27 // pred_fallthru
          _
        // Predicated region
        $region33: #{_lambda_.1} parent=27 // pred_check
          %p315 = pneg %p112
        $region34: #{_lambda_.1} parent=27 // pred_check_branch
          %317 = sbr.rel (%p315) target = $region36
        $region35: #{_lambda_.1} parent=27 // pred_region
          %s318 = smul.u32 2, %s21
          %320 = vsyncadd %s294, 0
          %s321 = smul.addr %s318, 8
          %s322 = scalar_lea.hbm %s3, %s321
          %s323 = sshll.u32 %s297, 4
          %s324 = int_to_ptr.vmem [resolvable:$true] %s323
          %s325 = sshll.u32 %s322, 4
          %s326 = int_to_ptr.hbm [resolvable:$true] %s325
          %331 = dma.vmem_to_hbm [thread:$0]  %s324, 256, %s326, %s294, 128, 128, 8
        $region36: #{_lambda_.1} parent=27 // pred_fallthru
          _
      $region28: #{_lambda_.1} parent=5 // pred_fallthru
        _
      %p332 = scmp.le.s32.totalorder 2, %s16
      // Predicated region
      $region37: #{_lambda_.1} parent=5 // pred_check
        %p333 = pneg %p332
      $region38: #{_lambda_.1} parent=5 // pred_check_branch
        %335 = sbr.rel (%p333) target = $region40
      $region39: #{_lambda_.1} parent=5 // pred_region
        %s336 = ssub.s32 %s16, 2
        // Predicated region
        $region41: #{_lambda_.1} parent=39 // pred_check
          %p337 = pneg %p92
        $region42: #{_lambda_.1} parent=39 // pred_check_branch
          %339 = sbr.rel (%p337) target = $region44
        $region43: #{_lambda_.1} parent=39 // pred_region
          %s340 = sand.u32 %s77, 1
          %s341 = scalar_lea.sflag [#allocation3], %s340
          %s342 = sand.u32 %s77, 1
          %s343 = smul.addr %s342, 8
          %s344 = scalar_lea.vmem [#allocation2], %s343
          %346 = dma.done %s341, 128
        $region44: #{_lambda_.1} parent=39 // pred_fallthru
          _
        // Predicated region
        $region45: #{_lambda_.1} parent=39 // pred_check
          %p347 = pneg %p118
        $region46: #{_lambda_.1} parent=39 // pred_check_branch
          %349 = sbr.rel (%p347) target = $region48
        $region47: #{_lambda_.1} parent=39 // pred_region
          %s350 = sand.u32 %s103, 1
          %s351 = scalar_lea.sflag [#allocation5], %s350
          %s352 = sand.u32 %s103, 1
          %s353 = smul.addr %s352, 16
          %s354 = scalar_lea.vmem [#allocation4], %s353
          %356 = dma.done %s351, 256
        $region48: #{_lambda_.1} parent=39 // pred_fallthru
          _
      $region40: #{_lambda_.1} parent=5 // pred_fallthru
        _
    $region6: #{_lambda_.1} parent=1 // loop_footer
      %s20 = sadd.s32 1, %s16
    $region7: #{_lambda_.1} parent=1 // loop_footer_branch
      %15 = sbr.rel target = $region3
    $region8: #{_lambda_.1} parent=1 // loop_exit
      _
    %357 = vsyncpa [#allocation3], 1
    %s358 = scalar_lea.sflag [#allocation3], 1
    %359 = vsyncpa %s358, 1
    %360 = vsyncpa [#allocation5], 1
    %s361 = scalar_lea.sflag [#allocation5], 1
    %362 = vsyncpa %s361, 1

</llo_original>
